<compile_context>
chip_gen: v6e
topology: v6e:2x2x1
jax: 0.10.0
libtpu: 0.0.40
codegen_flags: <defaults>
</compile_context>

<pallas_src>
import functools

import jax
import jax.numpy as jnp
from jax.experimental import pallas as pl
from jax.experimental.pallas import tpu as pltpu

_BN_EPS = 1e-5


# ---------------------------------------------------------------------------
# Fused kernel: grid axis = (2 * num_tiles,), sequential ("arbitrary").
#   steps [0, nt)      : fc1 + relu, cache h1, accumulate BN statistics
#   step  nt - 1       : fold BN affine into (scale, shift) in VMEM
#   steps [nt, 2*nt)   : normalize cached h1, fc2 + relu, fc3 + tanh, store
# ---------------------------------------------------------------------------
def actor_fused_kernel(x_ref, w1_ref, b1_ref, g2_ref, be2_ref,
                       w2_ref, b2_ref, w3_ref, b3_ref,
                       out_ref,
                       h1_ref, sum_ref, sq_ref, scale_ref, shift_ref,
                       *, num_tiles, tile_b, batch, act_size, mask_tail):
    i = pl.program_id(0)

    @pl.when(i == 0)
    def _():
        sum_ref[...] = jnp.zeros_like(sum_ref)
        sq_ref[...] = jnp.zeros_like(sq_ref)

    # ---- phase 0: fc1 + relu, cache h1, accumulate full-batch statistics ----
    @pl.when(i < num_tiles)
    def _():
        h1 = jnp.dot(x_ref[...].astype(jnp.bfloat16), w1_ref[...],
                     preferred_element_type=jnp.float32) + b1_ref[...]
        h1 = jnp.maximum(h1, 0.0)

        if mask_tail:
            # batch was padded up to num_tiles * tile_b: keep pad rows out of stats
            rows = i * tile_b + jax.lax.broadcasted_iota(jnp.int32, (tile_b, 1), 0)
            valid = (rows < batch).astype(jnp.float32)
            h1s = h1 * valid
        else:
            h1s = h1
        sum_ref[...] += jnp.sum(h1s, axis=0, keepdims=True)
        sq_ref[...] += jnp.sum(h1s * h1, axis=0, keepdims=True)

        h1_ref[i] = h1.astype(h1_ref.dtype)

    # ---- fold BN affine into (scale, shift) once all tiles are accumulated --
    @pl.when(i == num_tiles - 1)
    def _():
        inv_b = 1.0 / batch
        mean = sum_ref[...] * inv_b
        # biased variance, clamped: one-pass E[x^2]-mean^2 can go slightly negative
        var = jnp.maximum(sq_ref[...] * inv_b - mean * mean, 0.0)
        scale = g2_ref[...] * jax.lax.rsqrt(var + _BN_EPS)
        scale_ref[...] = scale
        shift_ref[...] = be2_ref[...] - mean * scale

    # ---- phase 1: normalize cached h1, fc2 + relu, fc3 + tanh, store --------
    @pl.when(i >= num_tiles)
    def _():
        t = i - num_tiles
        h1 = h1_ref[t].astype(jnp.float32)
        h1n = h1 * scale_ref[...] + shift_ref[...]

        h2 = jnp.dot(h1n.astype(jnp.bfloat16), w2_ref[...],
                     preferred_element_type=jnp.float32) + b2_ref[...]
        h2 = jnp.maximum(h2, 0.0)

        # fc3 runs at a lane-dense padded width; only real action columns are
        # biased / tanh'ed / stored (small unpadded output stream).
        y = jnp.dot(h2.astype(jnp.bfloat16), w3_ref[...],
                    preferred_element_type=jnp.float32)
        out_ref[...] = jnp.tanh(y[:, :act_size] + b3_ref[...])


def _pick_batch_tile(batch, max_tile):
    """Return (tile_b, num_tiles, padded_batch); tile_b is a multiple of 8."""
    b8 = -(-batch // 8) * 8
    if b8 <= max_tile:
        return b8, 1, b8
    cap = max_tile - (max_tile % 8)
    for tb in range(cap, 7, -8):          # prefer an exact divisor (no padding)
        if batch % tb == 0:
            return tb, batch // tb, batch
    nt = -(-batch // cap)                 # awkward batch: pad up, mask the tail
    return cap, nt, nt * cap


def actor_forward(state, prepared, *, max_batch_tile=1024):
    """state: (B, state_size) or (state_size,) f32. prepared: see prepare_params."""
    if state.ndim == 1:
        state = state[None, :]
    w1b, b1 = prepared["w1"], prepared["b1"]
    g2, be2 = prepared["gamma2"], prepared["beta2"]
    w2b, b2 = prepared["w2"], prepared["b2"]
    w3p, b3 = prepared["w3"], prepared["b3"]

    B, S = state.shape
    F1 = w1b.shape[1]
    F2 = w2b.shape[1]
    A_pad = w3p.shape[1]
    A = b3.shape[1]

    TB, num_tiles, B_pad = _pick_batch_tile(B, max_batch_tile)
    if B_pad != B:
        state = jnp.pad(state, ((0, B_pad - B), (0, 0)))

    # h1 cache stays f32 while small; bf16 for big batches so it fits comfortably
    # inside v7x's 64 MiB VMEM.
    # TODO(synk): for truly huge batches (>~120K rows) fall back to a two-sweep
    # recompute variant instead of caching h1 in VMEM.
    h1_dtype = jnp.float32 if B_pad * F1 * 4 <= 8 * 1024 * 1024 else jnp.bfloat16

    const2d = lambda i: (0, 0)
    row_spec = lambda shape: pl.BlockSpec(shape, const2d)

    kernel = functools.partial(
        actor_fused_kernel, num_tiles=num_tiles, tile_b=TB, batch=B,
        act_size=A, mask_tail=(B_pad != B))

    flops = 2 * B_pad * (S * F1 + F1 * F2 + F2 * A_pad) + 6 * B_pad * F1
    bytes_accessed = (B_pad * S * 4 + B_pad * A * 4
                      + 2 * (w1b.size + w2b.size + w3p.size)
                      + 4 * (b1.size + b2.size + b3.size + g2.size + be2.size))
    cost = pl.CostEstimate(flops=flops, transcendentals=B_pad * A + F1,
                           bytes_accessed=bytes_accessed)

    h1_bytes = num_tiles * TB * F1 * (4 if h1_dtype == jnp.float32 else 2)
    vmem_need = (2 * TB * S * 4 + B_pad * A * 4 + h1_bytes
                 + 2 * (w1b.size + w2b.size + w3p.size)
                 + 4 * (b1.size + b2.size + b3.size + g2.size + be2.size)
                 + 8 * F1 * 4 + (64 << 10))
    vmem_limit = int(min(64 << 20, max(32 << 20, 2 * vmem_need)))

    out = pl.pallas_call(
        kernel,
        out_shape=jax.ShapeDtypeStruct((B_pad, A), jnp.float32),
        grid=(2 * num_tiles,),
        in_specs=[
            # state tile advances during phase 0, then stays put (no re-read).
            pl.BlockSpec((TB, S), lambda i: (jnp.minimum(i, num_tiles - 1), 0)),
            row_spec((S, F1)),     # w1 (bf16, resident)
            row_spec((1, F1)),     # b1
            row_spec((1, F1)),     # gamma2
            row_spec((1, F1)),     # beta2
            row_spec((F1, F2)),    # w2 (bf16, resident)
            row_spec((1, F2)),     # b2
            row_spec((F2, A_pad)), # w3 (bf16, lane-padded, resident)
            row_spec((1, A)),      # b3 (unpadded)
        ],
        # output block only advances (and writes back) during phase 1.
        out_specs=pl.BlockSpec((TB, A), lambda i: (jnp.maximum(i - num_tiles, 0), 0)),
        scratch_shapes=[
            pltpu.VMEM((num_tiles, TB, F1), h1_dtype),   # cached h1
            pltpu.VMEM((1, F1), jnp.float32),            # sum
            pltpu.VMEM((1, F1), jnp.float32),            # sum of squares
            pltpu.VMEM((1, F1), jnp.float32),            # folded BN scale
            pltpu.VMEM((1, F1), jnp.float32),            # folded BN shift
        ],
        compiler_params=pltpu.CompilerParams(
            # TODO(synk): the full-batch stats reduction + phase ordering pins this
            # grid to one TensorCore; a v7x dual-TC split needs per-core partial
            # sums combined via core_map/CMEM.
            dimension_semantics=("arbitrary",),
            vmem_limit_bytes=vmem_limit),
        cost_estimate=cost,
    )(state, w1b, b1, g2, be2, w2b, b2, w3p, b3)

    return out[:B] if B_pad != B else out


def init_params(key, state_size, action_size, fc1_size=128, fc2_size=128):
    """f32 master parameters mirroring the PyTorch module's init scheme."""
    ks = jax.random.split(key, 6)
    lim1 = 1.0 / jnp.sqrt(fc1_size)   # init_interval uses weight.size()[0] = out_features
    lim2 = 1.0 / jnp.sqrt(fc2_size)
    # Weights stored as (in, out) == transposed PyTorch layout.
    w1 = jax.random.uniform(ks[0], (state_size, fc1_size), jnp.float32, -lim1, lim1)
    b1 = jax.random.uniform(ks[1], (1, fc1_size), jnp.float32, -lim1, lim1)
    w2 = jax.random.uniform(ks[2], (fc1_size, fc2_size), jnp.float32, -lim2, lim2)
    b2 = jax.random.uniform(ks[3], (1, fc2_size), jnp.float32, -lim2, lim2)
    w3 = jax.random.uniform(ks[4], (fc2_size, action_size), jnp.float32, -3e-3, 3e-3)
    b3 = jax.random.uniform(ks[5], (1, action_size), jnp.float32, -3e-3, 3e-3)
    gamma2 = jnp.ones((1, fc1_size), jnp.float32)    # BatchNorm1d affine defaults
    beta2 = jnp.zeros((1, fc1_size), jnp.float32)
    return dict(w1=w1, b1=b1, w2=w2, b2=b2, w3=w3, b3=b3,
                gamma2=gamma2, beta2=beta2)


def prepare_params(params):
    """One-time preprocessing: bf16 MXU weights, lane-padded w3. Call once, reuse."""
    F2, A = params["w3"].shape
    A_pad = 128 * (-(-A // 128))
    w3p = jnp.zeros((F2, A_pad), jnp.bfloat16).at[:, :A].set(
        params["w3"].astype(jnp.bfloat16))
    return dict(
        w1=params["w1"].astype(jnp.bfloat16), b1=params["b1"],
        gamma2=params["gamma2"], beta2=params["beta2"],
        w2=params["w2"].astype(jnp.bfloat16), b2=params["b2"],
        w3=w3p, b3=params["b3"])


def actor_reference(state, params):
    """Pure-JAX f32 reference of the PyTorch forward (train-mode BatchNorm)."""
    h1 = jnp.maximum(state @ params["w1"] + params["b1"], 0.0)
    mean = jnp.mean(h1, axis=0, keepdims=True)
    var = jnp.mean(jnp.square(h1 - mean), axis=0, keepdims=True)
    h1n = (h1 - mean) * jax.lax.rsqrt(var + _BN_EPS) * params["gamma2"] + params["beta2"]
    h2 = jnp.maximum(h1n @ params["w2"] + params["b2"], 0.0)
    return jnp.tanh(h2 @ params["w3"] + params["b3"])


if __name__ == "__main__":
    state_size, action_size, batch = 32, 8, 8
    key = jax.random.PRNGKey(0)
    k_param, k_state = jax.random.split(key)

    params = init_params(k_param, state_size, action_size)
    prepared = prepare_params(params)          # one-time bf16 cast / pad
    state = jax.random.normal(k_state, (batch, state_size), jnp.float32)

    out = jax.block_until_ready(actor_forward(state, prepared))

    assert out.shape == (batch, action_size)
    assert bool(jnp.all(jnp.isfinite(out)))
    assert bool(jnp.all(jnp.abs(out) <= 1.0))                  # tanh range

    ref = actor_reference(state, params)                       # f32 reference
    assert float(jnp.max(jnp.abs(out - ref))) < 2e-2           # bf16-MXU tolerance

    print("KERNEL_OK")
</pallas_src>

<mosaic_0001>
module attributes {stable_mosaic.version = 11 : i64} {
  func.func @actor_fused_kernel(%arg0: i32, %arg1: memref<8x32xf32, #tpu.memory_space<vmem>>, %arg2: memref<32x128xbf16, #tpu.memory_space<vmem>>, %arg3: memref<1x128xf32, #tpu.memory_space<vmem>>, %arg4: memref<1x128xf32, #tpu.memory_space<vmem>>, %arg5: memref<1x128xf32, #tpu.memory_space<vmem>>, %arg6: memref<128x128xbf16, #tpu.memory_space<vmem>>, %arg7: memref<1x128xf32, #tpu.memory_space<vmem>>, %arg8: memref<128x128xbf16, #tpu.memory_space<vmem>>, %arg9: memref<1x8xf32, #tpu.memory_space<vmem>>, %arg10: memref<8x8xf32, #tpu.memory_space<vmem>>, %arg11: memref<1x8x128xf32, #tpu.memory_space<vmem>>, %arg12: memref<1x128xf32, #tpu.memory_space<vmem>>, %arg13: memref<1x128xf32, #tpu.memory_space<vmem>>, %arg14: memref<1x128xf32, #tpu.memory_space<vmem>>, %arg15: memref<1x128xf32, #tpu.memory_space<vmem>>) attributes {dimension_semantics = [#tpu.dimension_semantics<arbitrary>], iteration_bounds = array<i64: 2>, scalar_prefetch = 0 : i64, scratch_operands = 5 : i64, tpu.core_type = #tpu.core_type<tc>, window_params = [{transform_indices = @transform_0, window_bounds = array<i64: 8, 32>}, {pipeline_mode = #tpu.pipeline_mode<synchronous>, transform_indices = @transform_1, window_bounds = array<i64: 32, 128>}, {pipeline_mode = #tpu.pipeline_mode<synchronous>, transform_indices = @transform_2, window_bounds = array<i64: 1, 128>}, {pipeline_mode = #tpu.pipeline_mode<synchronous>, transform_indices = @transform_3, window_bounds = array<i64: 1, 128>}, {pipeline_mode = #tpu.pipeline_mode<synchronous>, transform_indices = @transform_4, window_bounds = array<i64: 1, 128>}, {pipeline_mode = #tpu.pipeline_mode<synchronous>, transform_indices = @transform_5, window_bounds = array<i64: 128, 128>}, {pipeline_mode = #tpu.pipeline_mode<synchronous>, transform_indices = @transform_6, window_bounds = array<i64: 1, 128>}, {pipeline_mode = #tpu.pipeline_mode<synchronous>, transform_indices = @transform_7, window_bounds = array<i64: 128, 128>}, {pipeline_mode = #tpu.pipeline_mode<synchronous>, transform_indices = @transform_8, window_bounds = array<i64: 1, 8>}, {transform_indices = @transform_9, window_bounds = array<i64: 8, 8>}]} {
    %c0_i32 = arith.constant 0 : i32
    %0 = arith.cmpi eq, %arg0, %c0_i32 : i32
    %1 = arith.extui %0 : i1 to i32
    %c0_i32_0 = arith.constant 0 : i32
    %2 = arith.cmpi ne, %1, %c0_i32_0 : i32
    scf.if %2 {
      %cst = arith.constant 0.000000e+00 : f32
      %12 = vector.broadcast %cst : f32 to vector<1x128xf32>
      %c0 = arith.constant 0 : index
      %c0_6 = arith.constant 0 : index
      %13 = vector.load %arg12[%c0, %c0_6] : memref<1x128xf32, #tpu.memory_space<vmem>>, vector<1x128xf32>
      tpu.vector_store %arg12[%c0, %c0_6], %12 {strides = array<i32>} : memref<1x128xf32, #tpu.memory_space<vmem>>, vector<1x128xf32>,
      %cst_7 = arith.constant 0.000000e+00 : f32
      %14 = vector.broadcast %cst_7 : f32 to vector<1x128xf32>
      %c0_8 = arith.constant 0 : index
      %c0_9 = arith.constant 0 : index
      %15 = vector.load %arg13[%c0_8, %c0_9] : memref<1x128xf32, #tpu.memory_space<vmem>>, vector<1x128xf32>
      tpu.vector_store %arg13[%c0_8, %c0_9], %14 {strides = array<i32>} : memref<1x128xf32, #tpu.memory_space<vmem>>, vector<1x128xf32>,
    } else {
    }
    %c1_i32 = arith.constant 1 : i32
    %3 = arith.cmpi slt, %arg0, %c1_i32 : i32
    %4 = arith.extui %3 : i1 to i32
    %c0_i32_1 = arith.constant 0 : i32
    %5 = arith.cmpi ne, %4, %c0_i32_1 : i32
    scf.if %5 {
      %c0 = arith.constant 0 : index
      %c0_6 = arith.constant 0 : index
      %12 = vector.load %arg1[%c0, %c0_6] : memref<8x32xf32, #tpu.memory_space<vmem>>, vector<8x32xf32>
      %13 = arith.truncf %12 : vector<8x32xf32> to vector<8x32xbf16>
      %c0_7 = arith.constant 0 : index
      %c0_8 = arith.constant 0 : index
      %14 = vector.load %arg2[%c0_7, %c0_8] : memref<32x128xbf16, #tpu.memory_space<vmem>>, vector<32x128xbf16>
      %cst = arith.constant dense<0.000000e+00> : vector<8x128xf32>
      %15 = tpu.matmul %13, %14, %cst {dimension_numbers = #tpu.dot_dimension_numbers<[1], [0], [0], [1], [0, 0, 1, 1], [], []>} : vector<8x32xbf16>, vector<32x128xbf16>, vector<8x128xf32> -> vector<8x128xf32>
      %c0_9 = arith.constant 0 : index
      %c0_10 = arith.constant 0 : index
      %16 = vector.load %arg3[%c0_9, %c0_10] : memref<1x128xf32, #tpu.memory_space<vmem>>, vector<1x128xf32>
      %17 = vector.broadcast %16 : vector<1x128xf32> to vector<8x128xf32>
      %18 = arith.addf %15, %17 : vector<8x128xf32>
      %cst_11 = arith.constant 0.000000e+00 : f32
      %19 = vector.broadcast %cst_11 : f32 to vector<8x128xf32>
      %20 = arith.maximumf %18, %19 : vector<8x128xf32>
      %c0_12 = arith.constant 0 : index
      %c0_13 = arith.constant 0 : index
      %21 = vector.load %arg12[%c0_12, %c0_13] : memref<1x128xf32, #tpu.memory_space<vmem>>, vector<1x128xf32>
      %cst_14 = arith.constant dense<0.000000e+00> : vector<128xf32>
      %22 = vector.multi_reduction <add>, %20, %cst_14 [0] : vector<8x128xf32> to vector<128xf32>
      %23 = vector.shape_cast %22 : vector<128xf32> to vector<1x128xf32>
      %24 = arith.addf %21, %23 : vector<1x128xf32>
      %c0_15 = arith.constant 0 : index
      %c0_16 = arith.constant 0 : index
      %25 = vector.load %arg12[%c0_15, %c0_16] : memref<1x128xf32, #tpu.memory_space<vmem>>, vector<1x128xf32>
      tpu.vector_store %arg12[%c0_15, %c0_16], %24 {strides = array<i32>} : memref<1x128xf32, #tpu.memory_space<vmem>>, vector<1x128xf32>,
      %c0_17 = arith.constant 0 : index
      %c0_18 = arith.constant 0 : index
      %26 = vector.load %arg13[%c0_17, %c0_18] : memref<1x128xf32, #tpu.memory_space<vmem>>, vector<1x128xf32>
      %27 = arith.mulf %20, %20 : vector<8x128xf32>
      %cst_19 = arith.constant dense<0.000000e+00> : vector<128xf32>
      %28 = vector.multi_reduction <add>, %27, %cst_19 [0] : vector<8x128xf32> to vector<128xf32>
      %29 = vector.shape_cast %28 : vector<128xf32> to vector<1x128xf32>
      %30 = arith.addf %26, %29 : vector<1x128xf32>
      %c0_20 = arith.constant 0 : index
      %c0_21 = arith.constant 0 : index
      %31 = vector.load %arg13[%c0_20, %c0_21] : memref<1x128xf32, #tpu.memory_space<vmem>>, vector<1x128xf32>
      tpu.vector_store %arg13[%c0_20, %c0_21], %30 {strides = array<i32>} : memref<1x128xf32, #tpu.memory_space<vmem>>, vector<1x128xf32>,
      %32 = arith.index_cast %arg0 : i32 to index
      %c0_22 = arith.constant 0 : index
      %c0_23 = arith.constant 0 : index
      %33 = vector.load %arg11[%32, %c0_22, %c0_23] : memref<1x8x128xf32, #tpu.memory_space<vmem>>, vector<1x8x128xf32>
      %34 = vector.shape_cast %33 : vector<1x8x128xf32> to vector<8x128xf32>
      %35 = vector.shape_cast %20 : vector<8x128xf32> to vector<1x8x128xf32>
      tpu.vector_store %arg11[%32, %c0_22, %c0_23], %35 {strides = array<i32>} : memref<1x8x128xf32, #tpu.memory_space<vmem>>, vector<1x8x128xf32>,
    } else {
    }
    %c0_i32_2 = arith.constant 0 : i32
    %6 = arith.cmpi eq, %arg0, %c0_i32_2 : i32
    %7 = arith.extui %6 : i1 to i32
    %c0_i32_3 = arith.constant 0 : i32
    %8 = arith.cmpi ne, %7, %c0_i32_3 : i32
    scf.if %8 {
      %c0 = arith.constant 0 : index
      %c0_6 = arith.constant 0 : index
      %12 = vector.load %arg12[%c0, %c0_6] : memref<1x128xf32, #tpu.memory_space<vmem>>, vector<1x128xf32>
      %cst = arith.constant 1.250000e-01 : f32
      %13 = vector.broadcast %cst : f32 to vector<1x128xf32>
      %14 = arith.mulf %12, %13 : vector<1x128xf32>
      %c0_7 = arith.constant 0 : index
      %c0_8 = arith.constant 0 : index
      %15 = vector.load %arg13[%c0_7, %c0_8] : memref<1x128xf32, #tpu.memory_space<vmem>>, vector<1x128xf32>
      %cst_9 = arith.constant 1.250000e-01 : f32
      %16 = vector.broadcast %cst_9 : f32 to vector<1x128xf32>
      %17 = arith.mulf %15, %16 : vector<1x128xf32>
      %18 = arith.mulf %14, %14 : vector<1x128xf32>
      %19 = arith.subf %17, %18 : vector<1x128xf32>
      %cst_10 = arith.constant 0.000000e+00 : f32
      %20 = vector.broadcast %cst_10 : f32 to vector<1x128xf32>
      %21 = arith.maximumf %19, %20 : vector<1x128xf32>
      %c0_11 = arith.constant 0 : index
      %c0_12 = arith.constant 0 : index
      %22 = vector.load %arg4[%c0_11, %c0_12] : memref<1x128xf32, #tpu.memory_space<vmem>>, vector<1x128xf32>
      %cst_13 = arith.constant 9.99999974E-6 : f32
      %23 = vector.broadcast %cst_13 : f32 to vector<1x128xf32>
      %24 = arith.addf %21, %23 : vector<1x128xf32>
      %25 = math.rsqrt %24 : vector<1x128xf32>
      %26 = arith.mulf %22, %25 : vector<1x128xf32>
      %c0_14 = arith.constant 0 : index
      %c0_15 = arith.constant 0 : index
      %27 = vector.load %arg14[%c0_14, %c0_15] : memref<1x128xf32, #tpu.memory_space<vmem>>, vector<1x128xf32>
      tpu.vector_store %arg14[%c0_14, %c0_15], %26 {strides = array<i32>} : memref<1x128xf32, #tpu.memory_space<vmem>>, vector<1x128xf32>,
      %c0_16 = arith.constant 0 : index
      %c0_17 = arith.constant 0 : index
      %28 = vector.load %arg5[%c0_16, %c0_17] : memref<1x128xf32, #tpu.memory_space<vmem>>, vector<1x128xf32>
      %29 = arith.mulf %14, %26 : vector<1x128xf32>
      %30 = arith.subf %28, %29 : vector<1x128xf32>
      %c0_18 = arith.constant 0 : index
      %c0_19 = arith.constant 0 : index
      %31 = vector.load %arg15[%c0_18, %c0_19] : memref<1x128xf32, #tpu.memory_space<vmem>>, vector<1x128xf32>
      tpu.vector_store %arg15[%c0_18, %c0_19], %30 {strides = array<i32>} : memref<1x128xf32, #tpu.memory_space<vmem>>, vector<1x128xf32>,
    } else {
    }
    %c1_i32_4 = arith.constant 1 : i32
    %9 = arith.cmpi sge, %arg0, %c1_i32_4 : i32
    %10 = arith.extui %9 : i1 to i32
    %c0_i32_5 = arith.constant 0 : i32
    %11 = arith.cmpi ne, %10, %c0_i32_5 : i32
    scf.if %11 {
      %c1_i32_6 = arith.constant 1 : i32
      %12 = arith.subi %arg0, %c1_i32_6 : i32
      %13 = arith.index_cast %12 : i32 to index
      %c0 = arith.constant 0 : index
      %c0_7 = arith.constant 0 : index
      %14 = vector.load %arg11[%13, %c0, %c0_7] : memref<1x8x128xf32, #tpu.memory_space<vmem>>, vector<1x8x128xf32>
      %15 = vector.shape_cast %14 : vector<1x8x128xf32> to vector<8x128xf32>
      %c0_8 = arith.constant 0 : index
      %c0_9 = arith.constant 0 : index
      %16 = vector.load %arg14[%c0_8, %c0_9] : memref<1x128xf32, #tpu.memory_space<vmem>>, vector<1x128xf32>
      %17 = vector.broadcast %16 : vector<1x128xf32> to vector<8x128xf32>
      %18 = arith.mulf %15, %17 : vector<8x128xf32>
      %c0_10 = arith.constant 0 : index
      %c0_11 = arith.constant 0 : index
      %19 = vector.load %arg15[%c0_10, %c0_11] : memref<1x128xf32, #tpu.memory_space<vmem>>, vector<1x128xf32>
      %20 = vector.broadcast %19 : vector<1x128xf32> to vector<8x128xf32>
      %21 = arith.addf %18, %20 : vector<8x128xf32>
      %22 = arith.truncf %21 : vector<8x128xf32> to vector<8x128xbf16>
      %c0_12 = arith.constant 0 : index
      %c0_13 = arith.constant 0 : index
      %23 = vector.load %arg6[%c0_12, %c0_13] : memref<128x128xbf16, #tpu.memory_space<vmem>>, vector<128x128xbf16>
      %cst = arith.constant dense<0.000000e+00> : vector<8x128xf32>
      %24 = tpu.matmul %22, %23, %cst {dimension_numbers = #tpu.dot_dimension_numbers<[1], [0], [0], [1], [0, 0, 1, 1], [], []>} : vector<8x128xbf16>, vector<128x128xbf16>, vector<8x128xf32> -> vector<8x128xf32>
      %c0_14 = arith.constant 0 : index
      %c0_15 = arith.constant 0 : index
      %25 = vector.load %arg7[%c0_14, %c0_15] : memref<1x128xf32, #tpu.memory_space<vmem>>, vector<1x128xf32>
      %26 = vector.broadcast %25 : vector<1x128xf32> to vector<8x128xf32>
      %27 = arith.addf %24, %26 : vector<8x128xf32>
      %cst_16 = arith.constant 0.000000e+00 : f32
      %28 = vector.broadcast %cst_16 : f32 to vector<8x128xf32>
      %29 = arith.maximumf %27, %28 : vector<8x128xf32>
      %30 = arith.truncf %29 : vector<8x128xf32> to vector<8x128xbf16>
      %c0_17 = arith.constant 0 : index
      %c0_18 = arith.constant 0 : index
      %31 = vector.load %arg8[%c0_17, %c0_18] : memref<128x128xbf16, #tpu.memory_space<vmem>>, vector<128x128xbf16>
      %cst_19 = arith.constant dense<0.000000e+00> : vector<8x128xf32>
      %32 = tpu.matmul %30, %31, %cst_19 {dimension_numbers = #tpu.dot_dimension_numbers<[1], [0], [0], [1], [0, 0, 1, 1], [], []>} : vector<8x128xbf16>, vector<128x128xbf16>, vector<8x128xf32> -> vector<8x128xf32>
      %33 = vector.extract_strided_slice %32 {offsets = [0, 0], sizes = [8, 8], strides = [1, 1]} : vector<8x128xf32> to vector<8x8xf32>
      %c0_20 = arith.constant 0 : index
      %c0_21 = arith.constant 0 : index
      %34 = vector.load %arg9[%c0_20, %c0_21] : memref<1x8xf32, #tpu.memory_space<vmem>>, vector<1x8xf32>
      %35 = vector.broadcast %34 : vector<1x8xf32> to vector<8x8xf32>
      %36 = arith.addf %33, %35 : vector<8x8xf32>
      %37 = math.tanh %36 : vector<8x8xf32>
      %c0_22 = arith.constant 0 : index
      %c0_23 = arith.constant 0 : index
      %38 = vector.load %arg10[%c0_22, %c0_23] : memref<8x8xf32, #tpu.memory_space<vmem>>, vector<8x8xf32>
      tpu.vector_store %arg10[%c0_22, %c0_23], %37 {strides = array<i32>} : memref<8x8xf32, #tpu.memory_space<vmem>>, vector<8x8xf32>,
    } else {
    }
    return
  }
  func.func @transform_0(%arg0: i32) -> (i32, i32) {
    %c0_i32 = arith.constant 0 : i32
    %0 = arith.minsi %arg0, %c0_i32 : i32
    %c0_i32_0 = arith.constant 0 : i32
    %c0_i32_1 = arith.constant 0 : i32
    return %0, %c0_i32_0 : i32, i32
  }
  func.func @transform_1(%arg0: i32) -> (i32, i32) {
    %c0_i32 = arith.constant 0 : i32
    %c0_i32_0 = arith.constant 0 : i32
    %c0_i32_1 = arith.constant 0 : i32
    return %c0_i32, %c0_i32_0 : i32, i32
  }
  func.func @transform_2(%arg0: i32) -> (i32, i32) {
    %c0_i32 = arith.constant 0 : i32
    %c0_i32_0 = arith.constant 0 : i32
    %c0_i32_1 = arith.constant 0 : i32
    return %c0_i32, %c0_i32_0 : i32, i32
  }
  func.func @transform_3(%arg0: i32) -> (i32, i32) {
    %c0_i32 = arith.constant 0 : i32
    %c0_i32_0 = arith.constant 0 : i32
    %c0_i32_1 = arith.constant 0 : i32
    return %c0_i32, %c0_i32_0 : i32, i32
  }
  func.func @transform_4(%arg0: i32) -> (i32, i32) {
    %c0_i32 = arith.constant 0 : i32
    %c0_i32_0 = arith.constant 0 : i32
    %c0_i32_1 = arith.constant 0 : i32
    return %c0_i32, %c0_i32_0 : i32, i32
  }
  func.func @transform_5(%arg0: i32) -> (i32, i32) {
    %c0_i32 = arith.constant 0 : i32
    %c0_i32_0 = arith.constant 0 : i32
    %c0_i32_1 = arith.constant 0 : i32
    return %c0_i32, %c0_i32_0 : i32, i32
  }
  func.func @transform_6(%arg0: i32) -> (i32, i32) {
    %c0_i32 = arith.constant 0 : i32
    %c0_i32_0 = arith.constant 0 : i32
    %c0_i32_1 = arith.constant 0 : i32
    return %c0_i32, %c0_i32_0 : i32, i32
  }
  func.func @transform_7(%arg0: i32) -> (i32, i32) {
    %c0_i32 = arith.constant 0 : i32
    %c0_i32_0 = arith.constant 0 : i32
    %c0_i32_1 = arith.constant 0 : i32
    return %c0_i32, %c0_i32_0 : i32, i32
  }
  func.func @transform_8(%arg0: i32) -> (i32, i32) {
    %c0_i32 = arith.constant 0 : i32
    %c0_i32_0 = arith.constant 0 : i32
    %c0_i32_1 = arith.constant 0 : i32
    return %c0_i32, %c0_i32_0 : i32, i32
  }
  func.func @transform_9(%arg0: i32) -> (i32, i32) {
    %c1_i32 = arith.constant 1 : i32
    %0 = arith.subi %arg0, %c1_i32 : i32
    %c0_i32 = arith.constant 0 : i32
    %1 = arith.maxsi %0, %c0_i32 : i32
    %c0_i32_0 = arith.constant 0 : i32
    %c0_i32_1 = arith.constant 0 : i32
    return %1, %c0_i32_0 : i32, i32
  }
}

</mosaic_0001>

<llo_original>
// kernel: tpu_custom_call.1
$region0: #{tpu_custom_call.1}
  #allocation0 [shape = 'u32[]', space=smem, size = 0x4, offset = 0x4, fixed_abs, tag = 'smem constant byte address 0x4 - core index']
  #allocation1 [shape = 'u32[144,128]{1,0:T(1,128)}', space=vmem, size = 0x12000, scoped, tag = 'internal scratch']
  #allocation2 [shape = 'f32[1,8,128]{2,1,0:T(8,128)}', space=vmem, size = 0x1000, scoped, tag = 'scratch operand']
  #allocation3 [shape = 'f32[1,128]{1,0:T(1,128)}', space=vmem, size = 0x200, scoped, tag = 'scratch operand']
  #allocation4 [shape = 'f32[1,128]{1,0:T(1,128)}', space=vmem, size = 0x200, scoped, tag = 'scratch operand']
  #allocation5 [shape = 'f32[1,128]{1,0:T(1,128)}', space=vmem, size = 0x200, scoped, tag = 'scratch operand']
  #allocation6 [shape = 'f32[1,128]{1,0:T(1,128)}', space=vmem, size = 0x200, scoped, tag = 'scratch operand']
  %s0 = inlined_call_operand.hbm [shape: f32[8,32], index: 0, kind: input, shape index: {}]
  %s1 = inlined_call_operand.hbm [shape: bf16[32,128], index: 1, kind: input, shape index: {}]
  %s2 = inlined_call_operand.vmem [shape: f32[1,128], index: 2, kind: input, shape index: {}]
  %s3 = inlined_call_operand.vmem [shape: f32[1,128], index: 3, kind: input, shape index: {}]
  %s4 = inlined_call_operand.vmem [shape: f32[1,128], index: 4, kind: input, shape index: {}]
  %s5 = inlined_call_operand.hbm [shape: bf16[128,128], index: 5, kind: input, shape index: {}]
  %s6 = inlined_call_operand.vmem [shape: f32[1,128], index: 6, kind: input, shape index: {}]
  %s7 = inlined_call_operand.hbm [shape: bf16[128,128], index: 7, kind: input, shape index: {}]
  %s8 = inlined_call_operand.vmem [shape: f32[1,8], index: 8, kind: input, shape index: {}]
  %s9 = inlined_call_operand.hbm [shape: f32[8,8], index: 9, kind: output, shape index: {}]
  %s10 = sld [smem:[#allocation0]]
  $region101: #{tpu_custom_call.1} parent=0
    _
  %s12 = ssub.s32 1, %s10
  %s13 = scalar_select 0, %s12, %s10
  $region1: #{tpu_custom_call.1} parent=0
    #allocation7 [shape = 'u8[8192]{0}', space=vmem, size = 0x2000, scoped, tag = 'input window, operand 0']
    #allocation8 [shape = 's32[2]{0}', space=sflag, size = 0x8, scoped, tag = 'scoped memory for tpu_custom_call.1']
    #allocation9 [shape = 's32[2]{0}', space=sflag, size = 0x8, scoped, tag = 'scoped memory for tpu_custom_call.1']
    #allocation10 [shape = 'u8[8192]{0}', space=vmem, size = 0x2000, scoped, tag = 'input window, operand 1, single buffered']
    #allocation11 [shape = 's32[1]{0}', space=sflag, size = 0x4, scoped, tag = 'scoped memory for tpu_custom_call.1']
    #allocation12 [shape = 'u8[32768]{0}', space=vmem, size = 0x8000, scoped, tag = 'input window, operand 5, single buffered']
    #allocation13 [shape = 'u8[32768]{0}', space=vmem, size = 0x8000, scoped, tag = 'input window, operand 7, single buffered']
    #allocation14 [shape = 's32[1]{0}', space=sflag, size = 0x4, scoped, tag = 'scoped memory for tpu_custom_call.1']
    #allocation15 [shape = 'u8[8192]{0}', space=vmem, size = 0x2000, scoped, tag = 'output window, operand 0']
    %14 = vsyncpa [#allocation8], 0
    %s15 = scalar_lea.sflag [#allocation8], 1
    %16 = vsyncpa %s15, 0
    %17 = vsyncpa [#allocation11], 0
    %18 = vsyncpa [#allocation14], 0
    %19 = vsyncpa [#allocation9], 0
    %s20 = scalar_lea.sflag [#allocation9], 1
    %21 = vsyncpa %s20, 0
    loop: start=0, step=1, limit=4
    $region2: #{tpu_custom_call.1} parent=1 // loop_pre_header
      _
    $region3: #{tpu_custom_call.1} parent=1 // loop_header
      %s23 = sphi 0, %s27
      %p24 = scmp.ge.s32.totalorder %s23, 4
      %s37 = sphi 0, %s39
      %s40 = sphi 0, %s37
      %s41 = sphi 0, %s40
      %s57 = sphi 0, %s41
      %s61 = sphi 0, %s61
      %s63 = sphi 0, %s61
      %s64 = sphi 0, %s63
      %s78 = sphi 0, %s64
      %s82 = sphi 0, %s82
      %s84 = sphi 0, %s82
      %s85 = sphi 0, %s84
      %s99 = sphi 0, %s85
      %s103 = sphi 0, %s103
      %s105 = sphi 0, %s103
      %s106 = sphi 0, %s105
      %s120 = sphi 0, %s106
      %s124 = sphi 0, %s124
      %s126 = sphi 0, %s124
      %s127 = sphi 0, %s126
      %s141 = sphi 0, %s127
      %s145 = sphi 0, %s145
      %s147 = sphi 0, %s145
      %s148 = sphi 0, %s147
      %s162 = sphi 0, %s148
      %s166 = sphi 0, %s166
      %s168 = sphi 0, %s166
      %s169 = sphi 0, %s168
      %s183 = sphi 0, %s169
      %s187 = sphi 0, %s187
      %s189 = sphi 0, %s187
      %s190 = sphi 0, %s189
      %s204 = sphi 0, %s190
      %s208 = sphi 0, %s208
      %s210 = sphi 0, %s208
      %s211 = sphi 0, %s210
      %s225 = sphi 0, %s211
      %s237 = sphi 0, %s239
      %s240 = sphi 0, %s237
      %s241 = sphi 0, %s240
      %s257 = sphi 0, %s241
    $region4: #{tpu_custom_call.1} parent=1 // loop_header_branch
      %26 = sbr.rel (%p24) target = $region8
    $region5: #{tpu_custom_call.1} parent=1 // loop_body
      %s28 = ssub.s32 %s23, 1
      %s29 = ssub.s32 %s23, 2
      %s30 = sadd.s32 %s23, 1
      %p31 = scmp.lt.s32.totalorder %s23, 0
      %s32 = scalar_select %p31, %s23, 0
      %p33 = scmp.lt.s32.totalorder %s30, 0
      %s34 = scalar_select %p33, %s30, 0
      %s35 = ssub.s32 %s32, %s34
      %p36 = scmp.eq.s32.totalorder %s35, 0
      %s38 = sadd.s32 %s37, 1
      %s39 = scalar_select %p36, %s37, %s38
      %p42 = pneg %p36
      %p43 = scmp.eq.s32.totalorder %s23, 1
      %p44 = por %p42, %p43
      %p45 = scmp.ne.s32.totalorder %s37, %s40
      %p46 = scmp.eq.s32.totalorder %s23, 0
      %p47 = por %p45, %p46
      %p48 = scmp.ne.s32.totalorder %s37, %s40
      %p49 = scmp.eq.s32.totalorder %s28, 1
      %p50 = por %p48, %p49
      %p51 = scmp.ne.s32.totalorder %s40, %s41
      %p52 = scmp.eq.s32.totalorder %s28, 0
      %p53 = por %p51, %p52
      %p54 = scmp.ne.s32.totalorder %s40, %s41
      %p55 = scmp.eq.s32.totalorder %s29, 1
      %p56 = por %p54, %p55
      %p58 = scmp.ne.s32.totalorder %s41, %s57
      %p59 = scmp.eq.s32.totalorder %s29, 0
      %p60 = por %p58, %p59
      %s62 = sadd.s32 %s61, 1
      %p65 = scmp.eq.s32.totalorder %s23, 1
      %p66 = scmp.ne.s32.totalorder %s61, %s63
      %p67 = scmp.eq.s32.totalorder %s23, 0
      %p68 = por %p66, %p67
      %p69 = scmp.ne.s32.totalorder %s61, %s63
      %p70 = scmp.eq.s32.totalorder %s28, 1
      %p71 = por %p69, %p70
      %p72 = scmp.ne.s32.totalorder %s63, %s64
      %p73 = scmp.eq.s32.totalorder %s28, 0
      %p74 = por %p72, %p73
      %p75 = scmp.ne.s32.totalorder %s63, %s64
      %p76 = scmp.eq.s32.totalorder %s29, 1
      %p77 = por %p75, %p76
      %p79 = scmp.ne.s32.totalorder %s64, %s78
      %p80 = scmp.eq.s32.totalorder %s29, 0
      %p81 = por %p79, %p80
      %s83 = sadd.s32 %s82, 1
      %p86 = scmp.eq.s32.totalorder %s23, 1
      %p87 = scmp.ne.s32.totalorder %s82, %s84
      %p88 = scmp.eq.s32.totalorder %s23, 0
      %p89 = por %p87, %p88
      %p90 = scmp.ne.s32.totalorder %s82, %s84
      %p91 = scmp.eq.s32.totalorder %s28, 1
      %p92 = por %p90, %p91
      %p93 = scmp.ne.s32.totalorder %s84, %s85
      %p94 = scmp.eq.s32.totalorder %s28, 0
      %p95 = por %p93, %p94
      %p96 = scmp.ne.s32.totalorder %s84, %s85
      %p97 = scmp.eq.s32.totalorder %s29, 1
      %p98 = por %p96, %p97
      %p100 = scmp.ne.s32.totalorder %s85, %s99
      %p101 = scmp.eq.s32.totalorder %s29, 0
      %p102 = por %p100, %p101
      %s104 = sadd.s32 %s103, 1
      %p107 = scmp.eq.s32.totalorder %s23, 1
      %p108 = scmp.ne.s32.totalorder %s103, %s105
      %p109 = scmp.eq.s32.totalorder %s23, 0
      %p110 = por %p108, %p109
      %p111 = scmp.ne.s32.totalorder %s103, %s105
      %p112 = scmp.eq.s32.totalorder %s28, 1
      %p113 = por %p111, %p112
      %p114 = scmp.ne.s32.totalorder %s105, %s106
      %p115 = scmp.eq.s32.totalorder %s28, 0
      %p116 = por %p114, %p115
      %p117 = scmp.ne.s32.totalorder %s105, %s106
      %p118 = scmp.eq.s32.totalorder %s29, 1
      %p119 = por %p117, %p118
      %p121 = scmp.ne.s32.totalorder %s106, %s120
      %p122 = scmp.eq.s32.totalorder %s29, 0
      %p123 = por %p121, %p122
      %s125 = sadd.s32 %s124, 1
      %p128 = scmp.eq.s32.totalorder %s23, 1
      %p129 = scmp.ne.s32.totalorder %s124, %s126
      %p130 = scmp.eq.s32.totalorder %s23, 0
      %p131 = por %p129, %p130
      %p132 = scmp.ne.s32.totalorder %s124, %s126
      %p133 = scmp.eq.s32.totalorder %s28, 1
      %p134 = por %p132, %p133
      %p135 = scmp.ne.s32.totalorder %s126, %s127
      %p136 = scmp.eq.s32.totalorder %s28, 0
      %p137 = por %p135, %p136
      %p138 = scmp.ne.s32.totalorder %s126, %s127
      %p139 = scmp.eq.s32.totalorder %s29, 1
      %p140 = por %p138, %p139
      %p142 = scmp.ne.s32.totalorder %s127, %s141
      %p143 = scmp.eq.s32.totalorder %s29, 0
      %p144 = por %p142, %p143
      %s146 = sadd.s32 %s145, 1
      %p149 = scmp.eq.s32.totalorder %s23, 1
      %p150 = scmp.ne.s32.totalorder %s145, %s147
      %p151 = scmp.eq.s32.totalorder %s23, 0
      %p152 = por %p150, %p151
      %p153 = scmp.ne.s32.totalorder %s145, %s147
      %p154 = scmp.eq.s32.totalorder %s28, 1
      %p155 = por %p153, %p154
      %p156 = scmp.ne.s32.totalorder %s147, %s148
      %p157 = scmp.eq.s32.totalorder %s28, 0
      %p158 = por %p156, %p157
      %p159 = scmp.ne.s32.totalorder %s147, %s148
      %p160 = scmp.eq.s32.totalorder %s29, 1
      %p161 = por %p159, %p160
      %p163 = scmp.ne.s32.totalorder %s148, %s162
      %p164 = scmp.eq.s32.totalorder %s29, 0
      %p165 = por %p163, %p164
      %s167 = sadd.s32 %s166, 1
      %p170 = scmp.eq.s32.totalorder %s23, 1
      %p171 = scmp.ne.s32.totalorder %s166, %s168
      %p172 = scmp.eq.s32.totalorder %s23, 0
      %p173 = por %p171, %p172
      %p174 = scmp.ne.s32.totalorder %s166, %s168
      %p175 = scmp.eq.s32.totalorder %s28, 1
      %p176 = por %p174, %p175
      %p177 = scmp.ne.s32.totalorder %s168, %s169
      %p178 = scmp.eq.s32.totalorder %s28, 0
      %p179 = por %p177, %p178
      %p180 = scmp.ne.s32.totalorder %s168, %s169
      %p181 = scmp.eq.s32.totalorder %s29, 1
      %p182 = por %p180, %p181
      %p184 = scmp.ne.s32.totalorder %s169, %s183
      %p185 = scmp.eq.s32.totalorder %s29, 0
      %p186 = por %p184, %p185
      %s188 = sadd.s32 %s187, 1
      %p191 = scmp.eq.s32.totalorder %s23, 1
      %p192 = scmp.ne.s32.totalorder %s187, %s189
      %p193 = scmp.eq.s32.totalorder %s23, 0
      %p194 = por %p192, %p193
      %p195 = scmp.ne.s32.totalorder %s187, %s189
      %p196 = scmp.eq.s32.totalorder %s28, 1
      %p197 = por %p195, %p196
      %p198 = scmp.ne.s32.totalorder %s189, %s190
      %p199 = scmp.eq.s32.totalorder %s28, 0
      %p200 = por %p198, %p199
      %p201 = scmp.ne.s32.totalorder %s189, %s190
      %p202 = scmp.eq.s32.totalorder %s29, 1
      %p203 = por %p201, %p202
      %p205 = scmp.ne.s32.totalorder %s190, %s204
      %p206 = scmp.eq.s32.totalorder %s29, 0
      %p207 = por %p205, %p206
      %s209 = sadd.s32 %s208, 1
      %p212 = scmp.eq.s32.totalorder %s23, 1
      %p213 = scmp.ne.s32.totalorder %s208, %s210
      %p214 = scmp.eq.s32.totalorder %s23, 0
      %p215 = por %p213, %p214
      %p216 = scmp.ne.s32.totalorder %s208, %s210
      %p217 = scmp.eq.s32.totalorder %s28, 1
      %p218 = por %p216, %p217
      %p219 = scmp.ne.s32.totalorder %s210, %s211
      %p220 = scmp.eq.s32.totalorder %s28, 0
      %p221 = por %p219, %p220
      %p222 = scmp.ne.s32.totalorder %s210, %s211
      %p223 = scmp.eq.s32.totalorder %s29, 1
      %p224 = por %p222, %p223
      %p226 = scmp.ne.s32.totalorder %s211, %s225
      %p227 = scmp.eq.s32.totalorder %s29, 0
      %p228 = por %p226, %p227
      %s229 = ssub.s32 %s23, 1
      %p230 = scmp.gt.s32.totalorder %s229, 0
      %s231 = scalar_select %p230, %s229, 0
      %s232 = ssub.s32 %s30, 1
      %p233 = scmp.gt.s32.totalorder %s232, 0
      %s234 = scalar_select %p233, %s232, 0
      %s235 = ssub.s32 %s231, %s234
      %p236 = scmp.eq.s32.totalorder %s235, 0
      %s238 = sadd.s32 %s237, 1
      %s239 = scalar_select %p236, %s237, %s238
      %p242 = pneg %p236
      %p243 = scmp.eq.s32.totalorder %s23, 1
      %p244 = por %p242, %p243
      %p245 = scmp.ne.s32.totalorder %s237, %s240
      %p246 = scmp.eq.s32.totalorder %s23, 0
      %p247 = por %p245, %p246
      %p248 = scmp.ne.s32.totalorder %s237, %s240
      %p249 = scmp.eq.s32.totalorder %s28, 1
      %p250 = por %p248, %p249
      %p251 = scmp.ne.s32.totalorder %s240, %s241
      %p252 = scmp.eq.s32.totalorder %s28, 0
      %p253 = por %p251, %p252
      %p254 = scmp.ne.s32.totalorder %s240, %s241
      %p255 = scmp.eq.s32.totalorder %s29, 1
      %p256 = por %p254, %p255
      %p258 = scmp.ne.s32.totalorder %s241, %s257
      %p259 = scmp.eq.s32.totalorder %s29, 0
      %p260 = por %p258, %p259
      %p261 = scmp.le.s32.totalorder 1, %s23
      %p262 = scmp.lt.s32.totalorder %s23, 3
      %p263 = pnand %p261, %p262
      %p264 = pneg %p263
      // Predicated region
      $region9: #{tpu_custom_call.1} parent=5 // pred_check
        _
      $region10: #{tpu_custom_call.1} parent=5 // pred_check_branch
        %266 = sbr.rel (%p263) target = $region12
      $region11: #{tpu_custom_call.1} parent=5 // pred_region
        %s267 = ssub.s32 %s23, 1
        // Predicated region
        $region13: #{tpu_custom_call.1} parent=11 // pred_check
          %p268 = pneg %p74
        $region14: #{tpu_custom_call.1} parent=11 // pred_check_branch
          %270 = sbr.rel (%p268) target = $region16
        $region15: #{tpu_custom_call.1} parent=11 // pred_region
          %s272 = ssub.s32 256, 256
          %273 = vsyncadd [#allocation11], %s272
          %s274 = sshll.u32 [#allocation10], 4
          %s275 = int_to_ptr.vmem [resolvable:$true] %s274
          %280 = dma.hbm_to_vmem [thread:$0]  %s1, 256, %s275, [#allocation11], 64, 64, 4
        $region16: #{tpu_custom_call.1} parent=11 // pred_fallthru
          _
        // Predicated region
        $region17: #{tpu_custom_call.1} parent=11 // pred_check
          %p281 = pneg %p95
        $region18: #{tpu_custom_call.1} parent=11 // pred_check_branch
          %283 = sbr.rel (%p281) target = $region20
        $region19: #{tpu_custom_call.1} parent=11 // pred_region
          _
        $region20: #{tpu_custom_call.1} parent=11 // pred_fallthru
          _
        // Predicated region
        $region21: #{tpu_custom_call.1} parent=11 // pred_check
          %p284 = pneg %p116
        $region22: #{tpu_custom_call.1} parent=11 // pred_check_branch
          %286 = sbr.rel (%p284) target = $region24
        $region23: #{tpu_custom_call.1} parent=11 // pred_region
          _
        $region24: #{tpu_custom_call.1} parent=11 // pred_fallthru
          _
        // Predicated region
        $region25: #{tpu_custom_call.1} parent=11 // pred_check
          %p287 = pneg %p137
        $region26: #{tpu_custom_call.1} parent=11 // pred_check_branch
          %289 = sbr.rel (%p287) target = $region28
        $region27: #{tpu_custom_call.1} parent=11 // pred_region
          _
        $region28: #{tpu_custom_call.1} parent=11 // pred_fallthru
          _
        // Predicated region
        $region29: #{tpu_custom_call.1} parent=11 // pred_check
          %p290 = pneg %p158
        $region30: #{tpu_custom_call.1} parent=11 // pred_check_branch
          %292 = sbr.rel (%p290) target = $region32
        $region31: #{tpu_custom_call.1} parent=11 // pred_region
          %s294 = ssub.s32 1024, 1024
          %295 = vsyncadd [#allocation11], %s294
          %s296 = sshll.u32 [#allocation12], 4
          %s297 = int_to_ptr.vmem [resolvable:$true] %s296
          %302 = dma.hbm_to_vmem [thread:$0]  %s5, 1024, %s297, [#allocation11], 64, 64, 4
        $region32: #{tpu_custom_call.1} parent=11 // pred_fallthru
          _
        // Predicated region
        $region33: #{tpu_custom_call.1} parent=11 // pred_check
          %p303 = pneg %p179
        $region34: #{tpu_custom_call.1} parent=11 // pred_check_branch
          %305 = sbr.rel (%p303) target = $region36
        $region35: #{tpu_custom_call.1} parent=11 // pred_region
          _
        $region36: #{tpu_custom_call.1} parent=11 // pred_fallthru
          _
        // Predicated region
        $region37: #{tpu_custom_call.1} parent=11 // pred_check
          %p306 = pneg %p200
        $region38: #{tpu_custom_call.1} parent=11 // pred_check_branch
          %308 = sbr.rel (%p306) target = $region40
        $region39: #{tpu_custom_call.1} parent=11 // pred_region
          %s310 = ssub.s32 1024, 1024
          %311 = vsyncadd [#allocation14], %s310
          %s312 = sshll.u32 [#allocation13], 4
          %s313 = int_to_ptr.vmem [resolvable:$true] %s312
          %318 = dma.hbm_to_vmem [thread:$0]  %s7, 1024, %s313, [#allocation14], 64, 64, 4
        $region40: #{tpu_custom_call.1} parent=11 // pred_fallthru
          _
        // Predicated region
        $region41: #{tpu_custom_call.1} parent=11 // pred_check
          %p319 = pneg %p221
        $region42: #{tpu_custom_call.1} parent=11 // pred_check_branch
          %321 = sbr.rel (%p319) target = $region44
        $region43: #{tpu_custom_call.1} parent=11 // pred_region
          _
        $region44: #{tpu_custom_call.1} parent=11 // pred_fallthru
          _
      $region12: #{tpu_custom_call.1} parent=5 // pred_fallthru
        _
      %p322 = scmp.lt.s32.totalorder %s23, 2
      // Predicated region
      $region45: #{tpu_custom_call.1} parent=5 // pred_check
        %p323 = pneg %p322
      $region46: #{tpu_custom_call.1} parent=5 // pred_check_branch
        %325 = sbr.rel (%p323) target = $region48
      $region47: #{tpu_custom_call.1} parent=5 // pred_region
        // Predicated region
        $region49: #{tpu_custom_call.1} parent=47 // pred_check
          %p326 = pneg %p47
        $region50: #{tpu_custom_call.1} parent=47 // pred_check_branch
          %328 = sbr.rel (%p326) target = $region52
        $region51: #{tpu_custom_call.1} parent=47 // pred_region
          %s329 = sand.u32 %s37, 1
          %s330 = scalar_lea.sflag [#allocation8], %s329
          %s331 = sand.u32 %s37, 1
          %s332 = smul.addr %s331, 8
          %s333 = scalar_lea.vmem [#allocation7], %s332
          %p334 = scmp.lt.s32.totalorder %s23, 0
          %s335 = scalar_select %p334, %s23, 0
          %s337 = ssub.s32 128, 128
          %338 = vsyncadd %s330, %s337
          %s339 = smul.addr %s335, 128
          %s340 = scalar_lea.hbm %s0, %s339
          %s342 = sshll.u32 %s333, 4
          %s343 = int_to_ptr.vmem [resolvable:$true] %s342
          %345 = dma.hbm_to_vmem [thread:$0]  %s340, 128, %s343, %s330
        $region52: #{tpu_custom_call.1} parent=47 // pred_fallthru
          _
      $region48: #{tpu_custom_call.1} parent=5 // pred_fallthru
        _
      %p346 = scmp.le.s32.totalorder 1, %s23
      %p347 = scmp.lt.s32.totalorder %s23, 3
      %p348 = pnand %p346, %p347
      %p349 = pneg %p348
      // Predicated region
      $region53: #{tpu_custom_call.1} parent=5 // pred_check
        _
      $region54: #{tpu_custom_call.1} parent=5 // pred_check_branch
        %351 = sbr.rel (%p348) target = $region56
      $region55: #{tpu_custom_call.1} parent=5 // pred_region
        %s352 = ssub.s32 %s23, 1
        %s353 = sand.u32 %s40, 1
        %s354 = scalar_lea.sflag [#allocation8], %s353
        %s355 = sand.u32 %s40, 1
        %s356 = smul.addr %s355, 8
        %s357 = scalar_lea.vmem [#allocation7], %s356
        // Predicated region
        $region57: #{tpu_custom_call.1} parent=55 // pred_check
          %p358 = pneg %p53
        $region58: #{tpu_custom_call.1} parent=55 // pred_check_branch
          %360 = sbr.rel (%p358) target = $region60
        $region59: #{tpu_custom_call.1} parent=55 // pred_region
          %361 = dma.done %s354, 128
        $region60: #{tpu_custom_call.1} parent=55 // pred_fallthru
          _
        // Predicated region
        $region61: #{tpu_custom_call.1} parent=55 // pred_check
          %p362 = pneg %p74
        $region62: #{tpu_custom_call.1} parent=55 // pred_check_branch
          %364 = sbr.rel (%p362) target = $region64
        $region63: #{tpu_custom_call.1} parent=55 // pred_region
          %365 = dma.done [#allocation11], 256
        $region64: #{tpu_custom_call.1} parent=55 // pred_fallthru
          _
        // Predicated region
        $region65: #{tpu_custom_call.1} parent=55 // pred_check
          %p366 = pneg %p158
        $region66: #{tpu_custom_call.1} parent=55 // pred_check_branch
          %368 = sbr.rel (%p366) target = $region68
        $region67: #{tpu_custom_call.1} parent=55 // pred_region
          %369 = dma.done [#allocation11], 1024
        $region68: #{tpu_custom_call.1} parent=55 // pred_fallthru
          _
        // Predicated region
        $region69: #{tpu_custom_call.1} parent=55 // pred_check
          %p370 = pneg %p200
        $region70: #{tpu_custom_call.1} parent=55 // pred_check_branch
          %372 = sbr.rel (%p370) target = $region72
        $region71: #{tpu_custom_call.1} parent=55 // pred_region
          %373 = dma.done [#allocation14], 1024
        $region72: #{tpu_custom_call.1} parent=55 // pred_fallthru
          _
        %s374 = sand.u32 %s40, 1
        %s375 = scalar_lea.sflag [#allocation8], %s374
        %s376 = sand.u32 %s40, 1
        %s377 = smul.addr %s376, 8
        %s378 = scalar_lea.vmem [#allocation7], %s377
        %p379 = pneg %p53
        %p380 = pneg %p50
        %p381 = pneg %p74
        %p382 = pneg %p71
        %p383 = pneg %p95
        %p384 = pneg %p92
        %p385 = pneg %p116
        %p386 = pneg %p113
        %p387 = pneg %p137
        %p388 = pneg %p134
        %p389 = pneg %p158
        %p390 = pneg %p155
        %p391 = pneg %p179
        %p392 = pneg %p176
        %p393 = pneg %p200
        %p394 = pneg %p197
        %p395 = pneg %p221
        %p396 = pneg %p218
        %p397 = pneg %p253
        %p398 = pneg %p250
        %s399 = sand.u32 %s240, 1
        %s400 = scalar_lea.sflag [#allocation9], %s399
        %s401 = sand.u32 %s240, 1
        %s402 = smul.addr %s401, 8
        %s403 = scalar_lea.vmem [#allocation15], %s402
        %p404 = scmp.lt.s32.totalorder %s28, 0
        %s405 = scalar_select %p404, %s28, 0
        %s406 = ssub.s32 %s28, 1
        %p407 = scmp.gt.s32.totalorder %s406, 0
        %s408 = scalar_select %p407, %s406, 0
        %p410 = scmp.eq.s32.totalorder %s28, 0
        // Predicated region
        $region73: #{tpu_custom_call.1} parent=55 // pred_check
          %p411 = pneg %p410
        $region74: #{tpu_custom_call.1} parent=55 // pred_check_branch
          %413 = sbr.rel (%p411) target = $region76
        $region75: #{tpu_custom_call.1} parent=55 // pred_region
          %414 = vst [vmem:[#allocation3] sm:$0x1] 0.0
          %415 = vst [vmem:[#allocation4] sm:$0x1] 0.0
        $region76: #{tpu_custom_call.1} parent=55 // pred_fallthru
          _
        %p416 = scmp.lt.s32.totalorder %s28, 1
        // Predicated region
        $region77: #{tpu_custom_call.1} parent=55 // pred_check
          %p417 = pneg %p416
        $region78: #{tpu_custom_call.1} parent=55 // pred_check_branch
          %419 = sbr.rel (%p417) target = $region80
        $region79: #{tpu_custom_call.1} parent=55 // pred_region
          %v420 = vld [vmem:[%s357] sm:$0xff]
          %v421 = vpack.c.bf16 %v420, %v420
          %v422 = vld [vmem:[#allocation10] sm:$0xf]
          %v423 = vld [vmem:[#allocation10 + $0x4] sm:$0xf]
          %v424 = vld [vmem:[#allocation10 + $0x8] sm:$0xf]
          %v425 = vld [vmem:[#allocation10 + $0xc] sm:$0xf]
          %v426 = vld [vmem:[%s2] sm:$0x1]
          %v428 = vlaneseq
          %v429 = vshrl.u32 %v428, 7
          %v430 = vsub.s32 0, %v429
          %v431 = vrot.slane %v426, %v430
          %v437 = vunpack.c.l.b16 %v422
          %v438 = vunpack.c.l.b16 %v423
          %v439 = vunpack.c.l.b16 %v424
          %v440 = vunpack.c.l.b16 %v425
          %v441 = vpack.c.b16 %v438, %v437
          %v442 = vpack.c.b16 %v440, %v439
          %vm445 = vcmask 261120
          %v447 = vsel %vm445, %v421, 0
          %449 = vmatprep.subr.bf16.mxu0 0
          %450 = vmatpush1.bf16.msra.mxu0 0
          %451 = vmatprep.subr.bf16.mxu0 0
          %452 = vmatpush1.bf16.msra.mxu0 0
          %453 = vmatprep.subr.bf16.mxu0 0
          %454 = vmatpush1.bf16.msra.mxu0 0
          %455 = vmatprep.subr.bf16.mxu0 0
          %456 = vmatpush1.bf16.msra.mxu0 0
          %457 = vmatprep.subr.bf16.mxu0 0
          %458 = vmatpush1.bf16.msra.mxu0 0
          %459 = vmatprep.subr.bf16.mxu0 0
          %460 = vmatpush1.bf16.msra.mxu0 0
          %461 = vmatprep.subr.bf16.mxu0 0
          %462 = vmatpush1.bf16.msra.mxu0 %v442
          %463 = vmatprep.subr.bf16.mxu0 0
          %464 = vmatpush1.bf16.msra.mxu0 %v441
          %465 = vmatprep.subr.bf16.mxu0 0
          %466 = vmatpush2.bf16.msra.mxu0 0
          %467 = vmatprep.subr.bf16.mxu0 0
          %468 = vmatpush2.bf16.msra.mxu0 0
          %469 = vmatprep.subr.bf16.mxu0 0
          %470 = vmatpush2.bf16.msra.mxu0 0
          %471 = vmatprep.subr.bf16.mxu0 0
          %472 = vmatpush2.bf16.msra.mxu0 0
          %473 = vmatprep.subr.bf16.mxu0 0
          %474 = vmatpush2.bf16.msra.mxu0 0
          %475 = vmatprep.subr.bf16.mxu0 0
          %476 = vmatpush2.bf16.msra.mxu0 0
          %477 = vmatprep.subr.bf16.mxu0 0
          %478 = vmatpush2.bf16.msra.mxu0 0
          %479 = vmatprep.subr.bf16.mxu0 0
          %480 = vmatpush2.bf16.msra.mxu0 0
          %481 = vmatprep.mubr.bf16.mxu0 0
          %482 = vmatmul.mubr.bf16.gmra.mxu0 %v447
          %v483 = vpop.f32.mrf.mxu0
          %v484 = vadd.f32 %v431, %v483
          %v485 = vpop.f32.mrf.mxu0
          %v486 = vpop.f32.mrf.mxu0
          %v487 = vpop.f32.mrf.mxu0
          %488 = vdwg.mxu0
          %v489 = vmax.f32 %v484, 0.0
          %v490 = vld [vmem:[#allocation3] sm:$0x1]
          %v491 = vrot.slane %v489, 4
          %v492 = vadd.f32 %v489, %v491
          %v493 = vrot.slane %v492, 2
          %v494 = vadd.f32 %v492, %v493
          %v495 = vrot.slane %v494, 1
          %v496 = vadd.f32 %v494, %v495
          %v497 = vadd.f32 %v490, %v496
          %498 = vst [vmem:[#allocation3] sm:$0x1] %v497
          %v499 = vld [vmem:[#allocation4] sm:$0x1]
          %v500 = vmul.f32 %v489, %v489
          %v501 = vrot.slane %v500, 4
          %v502 = vadd.f32 %v500, %v501
          %v503 = vrot.slane %v502, 2
          %v504 = vadd.f32 %v502, %v503
          %v505 = vrot.slane %v504, 1
          %v506 = vadd.f32 %v504, %v505
          %v507 = vadd.f32 %v499, %v506
          %508 = vst [vmem:[#allocation4] sm:$0x1] %v507
          %s509 = smul.u32 %s28, 8
          %s510 = scalar_lea.vmem [#allocation2], %s509
          %511 = vst [vmem:[%s510] sm:$0xff] %v489
        $region80: #{tpu_custom_call.1} parent=55 // pred_fallthru
          _
        // Predicated region
        $region81: #{tpu_custom_call.1} parent=55 // pred_check
          %p512 = pneg %p410
        $region82: #{tpu_custom_call.1} parent=55 // pred_check_branch
          %514 = sbr.rel (%p512) target = $region84
        $region83: #{tpu_custom_call.1} parent=55 // pred_region
          %v515 = vld [vmem:[#allocation3] sm:$0x1]
          %v516 = vmul.f32 %v515, 0.125
          %v517 = vld [vmem:[#allocation4] sm:$0x1]
          %v518 = vmul.f32 %v517, 0.125
          %v519 = vmul.f32 %v516, %v516
          %v520 = vsub.f32 %v518, %v519
          %v521 = vmax.f32 %v520, 0.0
          %v522 = vld [vmem:[%s3] sm:$0x1]
          %v523 = vadd.f32 %v521, 1e-05
          %v524 = vrsqrt.pop %v523
          %v525 = vmul.f32 %v522, %v524
          %526 = vst [vmem:[#allocation5] sm:$0x1] %v525
          %v527 = vld [vmem:[%s4] sm:$0x1]
          %v528 = vmul.f32 %v516, %v525
          %v529 = vsub.f32 %v527, %v528
          %530 = vst [vmem:[#allocation6] sm:$0x1] %v529
        $region84: #{tpu_custom_call.1} parent=55 // pred_fallthru
          _
        %p531 = scmp.ge.s32.totalorder %s28, 1
        // Predicated region
        $region85: #{tpu_custom_call.1} parent=55 // pred_check
          %p532 = pneg %p531
        $region86: #{tpu_custom_call.1} parent=55 // pred_check_branch
          %534 = sbr.rel (%p532) target = $region88
        $region87: #{tpu_custom_call.1} parent=55 // pred_region
          %s535 = ssub.s32 %s28, 1
          %s536 = smul.u32 %s535, 8
          %s537 = scalar_lea.vmem [#allocation2], %s536
          %v538 = vld [vmem:[%s537] sm:$0xff]
          %v539 = vld [vmem:[#allocation5] sm:$0x1]
          %v541 = vlaneseq
          %v542 = vshrl.u32 %v541, 7
          %v543 = vsub.s32 0, %v542
          %v544 = vrot.slane %v539, %v543
          %v546 = vmul.f32 %v538, %v544
          %v547 = vld [vmem:[#allocation6] sm:$0x1]
          %v549 = vlaneseq
          %v550 = vshrl.u32 %v549, 7
          %v551 = vsub.s32 0, %v550
          %v552 = vrot.slane %v547, %v551
          %v554 = vadd.f32 %v546, %v552
          %v555 = vpack.c.bf16 %v554, %v554
          %v556 = vld [vmem:[#allocation12] sm:$0xf]
          %v557 = vld [vmem:[#allocation12 + $0x4] sm:$0xf]
          %v558 = vld [vmem:[#allocation12 + $0x8] sm:$0xf]
          %v559 = vld [vmem:[#allocation12 + $0xc] sm:$0xf]
          %v560 = vld [vmem:[#allocation12 + $0x10] sm:$0xf]
          %v561 = vld [vmem:[#allocation12 + $0x14] sm:$0xf]
          %v562 = vld [vmem:[#allocation12 + $0x18] sm:$0xf]
          %v563 = vld [vmem:[#allocation12 + $0x1c] sm:$0xf]
          %v564 = vld [vmem:[#allocation12 + $0x20] sm:$0xf]
          %v565 = vld [vmem:[#allocation12 + $0x24] sm:$0xf]
          %v566 = vld [vmem:[#allocation12 + $0x28] sm:$0xf]
          %v567 = vld [vmem:[#allocation12 + $0x2c] sm:$0xf]
          %v568 = vld [vmem:[#allocation12 + $0x30] sm:$0xf]
          %v569 = vld [vmem:[#allocation12 + $0x34] sm:$0xf]
          %v570 = vld [vmem:[#allocation12 + $0x38] sm:$0xf]
          %v571 = vld [vmem:[#allocation12 + $0x3c] sm:$0xf]
          %v572 = vld [vmem:[%s6] sm:$0x1]
          %v574 = vlaneseq
          %v575 = vshrl.u32 %v574, 7
          %v576 = vsub.s32 0, %v575
          %v577 = vrot.slane %v572, %v576
          %v595 = vunpack.c.l.b16 %v556
          %v596 = vunpack.c.l.b16 %v557
          %v597 = vunpack.c.l.b16 %v558
          %v598 = vunpack.c.l.b16 %v559
          %v599 = vunpack.c.l.b16 %v560
          %v600 = vunpack.c.l.b16 %v561
          %v601 = vunpack.c.l.b16 %v562
          %v602 = vunpack.c.l.b16 %v563
          %v603 = vunpack.c.l.b16 %v564
          %v604 = vunpack.c.l.b16 %v565
          %v605 = vunpack.c.l.b16 %v566
          %v606 = vunpack.c.l.b16 %v567
          %v607 = vunpack.c.l.b16 %v568
          %v608 = vunpack.c.l.b16 %v569
          %v609 = vunpack.c.l.b16 %v570
          %v610 = vunpack.c.l.b16 %v571
          %v611 = vpack.c.b16 %v596, %v595
          %v612 = vpack.c.b16 %v598, %v597
          %v613 = vpack.c.b16 %v600, %v599
          %v614 = vpack.c.b16 %v602, %v601
          %v615 = vpack.c.b16 %v604, %v603
          %v616 = vpack.c.b16 %v606, %v605
          %v617 = vpack.c.b16 %v608, %v607
          %v618 = vpack.c.b16 %v610, %v609
          %627 = vmatprep.subr.bf16.mxu0 0
          %628 = vmatpush1.bf16.msra.mxu0 %v618
          %629 = vmatprep.subr.bf16.mxu0 0
          %630 = vmatpush1.bf16.msra.mxu0 %v617
          %631 = vmatprep.subr.bf16.mxu0 0
          %632 = vmatpush1.bf16.msra.mxu0 %v616
          %633 = vmatprep.subr.bf16.mxu0 0
          %634 = vmatpush1.bf16.msra.mxu0 %v615
          %635 = vmatprep.subr.bf16.mxu0 0
          %636 = vmatpush1.bf16.msra.mxu0 %v614
          %637 = vmatprep.subr.bf16.mxu0 0
          %638 = vmatpush1.bf16.msra.mxu0 %v613
          %639 = vmatprep.subr.bf16.mxu0 0
          %640 = vmatpush1.bf16.msra.mxu0 %v612
          %641 = vmatprep.subr.bf16.mxu0 0
          %642 = vmatpush1.bf16.msra.mxu0 %v611
          %643 = vmatprep.subr.bf16.mxu0 0
          %644 = vmatpush2.bf16.msra.mxu0 0
          %645 = vmatprep.subr.bf16.mxu0 0
          %646 = vmatpush2.bf16.msra.mxu0 0
          %647 = vmatprep.subr.bf16.mxu0 0
          %648 = vmatpush2.bf16.msra.mxu0 0
          %649 = vmatprep.subr.bf16.mxu0 0
          %650 = vmatpush2.bf16.msra.mxu0 0
          %651 = vmatprep.subr.bf16.mxu0 0
          %652 = vmatpush2.bf16.msra.mxu0 0
          %653 = vmatprep.subr.bf16.mxu0 0
          %654 = vmatpush2.bf16.msra.mxu0 0
          %655 = vmatprep.subr.bf16.mxu0 0
          %656 = vmatpush2.bf16.msra.mxu0 0
          %657 = vmatprep.subr.bf16.mxu0 0
          %658 = vmatpush2.bf16.msra.mxu0 0
          %659 = vmatprep.mubr.bf16.mxu0 0
          %660 = vmatmul.mubr.bf16.gmra.mxu0 %v555
          %v661 = vpop.f32.mrf.mxu0
          %v662 = vadd.f32 %v577, %v661
          %v663 = vpop.f32.mrf.mxu0
          %v664 = vpop.f32.mrf.mxu0
          %v665 = vpop.f32.mrf.mxu0
          %666 = vdwg.mxu0
          %v667 = vmax.f32 %v662, 0.0
          %v668 = vpack.c.bf16 %v667, %v667
          %v669 = vld [vmem:[#allocation13] sm:$0xf]
          %v670 = vld [vmem:[#allocation13 + $0x4] sm:$0xf]
          %v671 = vld [vmem:[#allocation13 + $0x8] sm:$0xf]
          %v672 = vld [vmem:[#allocation13 + $0xc] sm:$0xf]
          %v673 = vld [vmem:[#allocation13 + $0x10] sm:$0xf]
          %v674 = vld [vmem:[#allocation13 + $0x14] sm:$0xf]
          %v675 = vld [vmem:[#allocation13 + $0x18] sm:$0xf]
          %v676 = vld [vmem:[#allocation13 + $0x1c] sm:$0xf]
          %v677 = vld [vmem:[#allocation13 + $0x20] sm:$0xf]
          %v678 = vld [vmem:[#allocation13 + $0x24] sm:$0xf]
          %v679 = vld [vmem:[#allocation13 + $0x28] sm:$0xf]
          %v680 = vld [vmem:[#allocation13 + $0x2c] sm:$0xf]
          %v681 = vld [vmem:[#allocation13 + $0x30] sm:$0xf]
          %v682 = vld [vmem:[#allocation13 + $0x34] sm:$0xf]
          %v683 = vld [vmem:[#allocation13 + $0x38] sm:$0xf]
          %v684 = vld [vmem:[#allocation13 + $0x3c] sm:$0xf]
          %v701 = vunpack.c.l.b16 %v669
          %v702 = vunpack.c.l.b16 %v670
          %v703 = vunpack.c.l.b16 %v671
          %v704 = vunpack.c.l.b16 %v672
          %v705 = vunpack.c.l.b16 %v673
          %v706 = vunpack.c.l.b16 %v674
          %v707 = vunpack.c.l.b16 %v675
          %v708 = vunpack.c.l.b16 %v676
          %v709 = vunpack.c.l.b16 %v677
          %v710 = vunpack.c.l.b16 %v678
          %v711 = vunpack.c.l.b16 %v679
          %v712 = vunpack.c.l.b16 %v680
          %v713 = vunpack.c.l.b16 %v681
          %v714 = vunpack.c.l.b16 %v682
          %v715 = vunpack.c.l.b16 %v683
          %v716 = vunpack.c.l.b16 %v684
          %v717 = vpack.c.b16 %v702, %v701
          %v718 = vpack.c.b16 %v704, %v703
          %v719 = vpack.c.b16 %v706, %v705
          %v720 = vpack.c.b16 %v708, %v707
          %v721 = vpack.c.b16 %v710, %v709
          %v722 = vpack.c.b16 %v712, %v711
          %v723 = vpack.c.b16 %v714, %v713
          %v724 = vpack.c.b16 %v716, %v715
          %733 = vmatprep.subr.bf16.mxu0 0
          %734 = vmatpush1.bf16.msra.mxu0 %v724
          %735 = vmatprep.subr.bf16.mxu0 0
          %736 = vmatpush1.bf16.msra.mxu0 %v723
          %737 = vmatprep.subr.bf16.mxu0 0
          %738 = vmatpush1.bf16.msra.mxu0 %v722
          %739 = vmatprep.subr.bf16.mxu0 0
          %740 = vmatpush1.bf16.msra.mxu0 %v721
          %741 = vmatprep.subr.bf16.mxu0 0
          %742 = vmatpush1.bf16.msra.mxu0 %v720
          %743 = vmatprep.subr.bf16.mxu0 0
          %744 = vmatpush1.bf16.msra.mxu0 %v719
          %745 = vmatprep.subr.bf16.mxu0 0
          %746 = vmatpush1.bf16.msra.mxu0 %v718
          %747 = vmatprep.subr.bf16.mxu0 0
          %748 = vmatpush1.bf16.msra.mxu0 %v717
          %749 = vmatprep.subr.bf16.mxu0 0
          %750 = vmatpush2.bf16.msra.mxu0 0
          %751 = vmatprep.subr.bf16.mxu0 0
          %752 = vmatpush2.bf16.msra.mxu0 0
          %753 = vmatprep.subr.bf16.mxu0 0
          %754 = vmatpush2.bf16.msra.mxu0 0
          %755 = vmatprep.subr.bf16.mxu0 0
          %756 = vmatpush2.bf16.msra.mxu0 0
          %757 = vmatprep.subr.bf16.mxu0 0
          %758 = vmatpush2.bf16.msra.mxu0 0
          %759 = vmatprep.subr.bf16.mxu0 0
          %760 = vmatpush2.bf16.msra.mxu0 0
          %761 = vmatprep.subr.bf16.mxu0 0
          %762 = vmatpush2.bf16.msra.mxu0 0
          %763 = vmatprep.subr.bf16.mxu0 0
          %764 = vmatpush2.bf16.msra.mxu0 0
          %765 = vmatprep.mubr.bf16.mxu0 0
          %766 = vmatmul.mubr.bf16.gmra.mxu0 %v668
          %v767 = vpop.f32.mrf.mxu0
          %v768 = vadd.f32 0.0, %v767
          %v769 = vpop.f32.mrf.mxu0
          %v770 = vpop.f32.mrf.mxu0
          %v771 = vpop.f32.mrf.mxu0
          %772 = vdwg.mxu0
          %v773 = vld [vmem:[%s8] sm:$0x1]
          %v775 = vlaneseq
          %v776 = vshrl.u32 %v775, 7
          %v777 = vsub.s32 0, %v776
          %v778 = vrot.slane %v773, %v777
          %v780 = vadd.f32 %v768, %v778
          %v781 = vtanh.pop %v780
          %vm782 = vcmask 64512
          %783 = vst.msk [vmem:[%s403] sm:$0xff] %vm782, %v781
        $region88: #{tpu_custom_call.1} parent=55 // pred_fallthru
          _
        %s784 = sand.u32 %s240, 1
        %s785 = scalar_lea.sflag [#allocation9], %s784
        %s786 = sand.u32 %s240, 1
        %s787 = smul.addr %s786, 8
        %s788 = scalar_lea.vmem [#allocation15], %s787
        // Predicated region
        $region89: #{tpu_custom_call.1} parent=55 // pred_check
          %p789 = pneg %p250
        $region90: #{tpu_custom_call.1} parent=55 // pred_check_branch
          %791 = sbr.rel (%p789) target = $region92
        $region91: #{tpu_custom_call.1} parent=55 // pred_region
          %s792 = ssub.s32 %s28, 1
          %p793 = scmp.gt.s32.totalorder %s792, 0
          %s794 = scalar_select %p793, %s792, 0
          %s796 = ssub.s32 128, 128
          %797 = vsyncadd %s785, %s796
          %s798 = smul.addr %s794, 128
          %s799 = scalar_lea.hbm %s9, %s798
          %s801 = sshll.u32 %s788, 4
          %s802 = int_to_ptr.vmem [resolvable:$true] %s801
          %804 = dma.vmem_to_hbm [thread:$0]  %s802, 128, %s799, %s785
        $region92: #{tpu_custom_call.1} parent=55 // pred_fallthru
          _
      $region56: #{tpu_custom_call.1} parent=5 // pred_fallthru
        _
      %p805 = scmp.le.s32.totalorder 2, %s23
      // Predicated region
      $region93: #{tpu_custom_call.1} parent=5 // pred_check
        %p806 = pneg %p805
      $region94: #{tpu_custom_call.1} parent=5 // pred_check_branch
        %808 = sbr.rel (%p806) target = $region96
      $region95: #{tpu_custom_call.1} parent=5 // pred_region
        %s809 = ssub.s32 %s23, 2
        // Predicated region
        $region97: #{tpu_custom_call.1} parent=95 // pred_check
          %p810 = pneg %p256
        $region98: #{tpu_custom_call.1} parent=95 // pred_check_branch
          %812 = sbr.rel (%p810) target = $region100
        $region99: #{tpu_custom_call.1} parent=95 // pred_region
          %s813 = sand.u32 %s241, 1
          %s814 = scalar_lea.sflag [#allocation9], %s813
          %s815 = sand.u32 %s241, 1
          %s816 = smul.addr %s815, 8
          %s817 = scalar_lea.vmem [#allocation15], %s816
          %818 = dma.done %s814, 128
        $region100: #{tpu_custom_call.1} parent=95 // pred_fallthru
          _
      $region96: #{tpu_custom_call.1} parent=5 // pred_fallthru
        _
    $region6: #{tpu_custom_call.1} parent=1 // loop_footer
      %s27 = sadd.s32 1, %s23
    $region7: #{tpu_custom_call.1} parent=1 // loop_footer_branch
      %22 = sbr.rel target = $region3
    $region8: #{tpu_custom_call.1} parent=1 // loop_exit
      _
    %819 = vsyncpa [#allocation8], 1
    %s820 = scalar_lea.sflag [#allocation8], 1
    %821 = vsyncpa %s820, 1
    %822 = vsyncpa [#allocation11], 1
    %823 = vsyncpa [#allocation14], 1
    %824 = vsyncpa [#allocation9], 1
    %s825 = scalar_lea.sflag [#allocation9], 1
    %826 = vsyncpa %s825, 1

</llo_original>
